<compile_context>
chip_gen: v5e
topology: v5e:2x2
jax: 0.10.0
libtpu: 0.0.40
codegen_flags: <defaults>
</compile_context>

<pallas_src>
import functools
import math

import jax
import jax.numpy as jnp
from jax.experimental import pallas as pl
from jax.experimental.pallas import tpu as pltpu


def _vmem_limit_bytes():
    """Per-generation scoped-VMEM limit (the 16/32 MiB scoped defaults are the real cap)."""
    try:
        cap = pltpu.get_tpu_info().vmem_capacity_bytes  # 128 MiB v5e/v6e, 64 MiB v7x
        return int(cap * 3 // 4)                        # ~96 MiB / ~48 MiB, leave headroom
    except Exception:                                   # off-TPU / API drift: conservative
        return 32 * 1024 * 1024


# ----------------------------------------------------------------------------
# Pallas kernel: Chebyshev recursion + ONE fused Theta matmul + bias
# (one batch element per grid step; grid axis 0 is batch and is "parallel")
# ----------------------------------------------------------------------------
def chebconv_kernel(x_ref, l2_ref, w_ref, b_ref, o_ref, basis_ref, *, K, Fin):
    # x_ref:     (N, Fin)       f32   (this batch element)
    # l2_ref:    (N, N)         bf16  (2 * dense scaled Laplacian; constant over grid)
    # w_ref:     (K*Fin, Fp)    bf16  (Theta stacked over hops; F_out padded to 128)
    # b_ref:     (1, Fp)        f32
    # o_ref:     (N, Fp)        f32   (lane-dense output block)
    # basis_ref: (N, K*Fin)     bf16  VMEM scratch holding the Chebyshev basis
    L2 = l2_ref[...]                                   # bf16, = 2 * L_hat
    tx_prev_f32 = x_ref[...]                           # Tx_0 in f32
    tx_prev_bf = tx_prev_f32.astype(jnp.bfloat16)
    basis_ref[:, 0:Fin] = tx_prev_bf

    if K > 1:
        # Tx_1 = L @ X = 0.5 * (2L) @ X   (0.5 is an exact exponent shift)
        tx_cur_f32 = 0.5 * jnp.dot(L2, tx_prev_bf, preferred_element_type=jnp.float32)
        tx_cur_bf = tx_cur_f32.astype(jnp.bfloat16)
        basis_ref[:, Fin:2 * Fin] = tx_cur_bf
        for k in range(2, K):                          # K is static -> unrolled
            # Tx_k = 2 * L @ Tx_{k-1} - Tx_{k-2}  ==  (2L) @ Tx_{k-1} - Tx_{k-2}
            tx_next_f32 = jnp.dot(L2, tx_cur_bf,
                                  preferred_element_type=jnp.float32) - tx_prev_f32
            tx_next_bf = tx_next_f32.astype(jnp.bfloat16)
            basis_ref[:, k * Fin:(k + 1) * Fin] = tx_next_bf
            tx_prev_f32 = tx_cur_f32
            tx_cur_f32 = tx_next_f32
            tx_cur_bf = tx_next_bf

    # Single fused MXU call over all K hops, f32 accumulation; f32 bias add on the VPU.
    out = jnp.dot(basis_ref[...], w_ref[...], preferred_element_type=jnp.float32)
    o_ref[...] = (out + b_ref[...]).astype(o_ref.dtype)


def chebconv_pallas(x, laplacian, weight, bias):
    """x: (B, N, F_in), laplacian: (N, N), weight: (K, F_in, F_out), bias: (F_out,)."""
    B, N, Fin = x.shape
    K, _, Fout = weight.shape
    LANE = 128
    Fp = ((Fout + LANE - 1) // LANE) * LANE            # lane-dense padded out-channels

    # ---- wrapper-side layout plumbing (plain JAX, outside the kernel) ----
    x_f32 = x.astype(jnp.float32)
    l2_bf = (2.0 * laplacian.astype(jnp.float32)).astype(jnp.bfloat16)   # 2 * L_hat
    # Fused weight over hops: w_flat[k*Fin + f, o] = weight[k, f, o]; F_out padded to Fp.
    w_flat = jnp.pad(weight.astype(jnp.float32).reshape(K * Fin, Fout),
                     ((0, 0), (0, Fp - Fout))).astype(jnp.bfloat16)
    b2d = jnp.pad(bias.astype(jnp.float32), (0, Fp - Fout)).reshape(1, Fp)

    kernel = functools.partial(chebconv_kernel, K=K, Fin=Fin)

    # Advisory cost estimate: (K-1) L@Tx passes + one fused Theta matmul, per batch.
    flops = B * (2 * (K - 1) * N * N * Fin + 2 * N * K * Fin * Fp)
    bytes_accessed = (x_f32.size * 4 + l2_bf.size * 2 + w_flat.size * 2
                      + b2d.size * 4 + B * N * Fp * 4)

    out = pl.pallas_call(
        kernel,
        out_shape=jax.ShapeDtypeStruct((B, N, Fp), jnp.float32),
        grid=(B,),
        in_specs=[
            pl.BlockSpec((None, N, Fin), lambda b: (b, 0, 0)),     # x: one batch / step
            pl.BlockSpec((N, N), lambda b: (0, 0)),                # 2*L (constant block)
            pl.BlockSpec((K * Fin, Fp), lambda b: (0, 0)),         # fused Theta (constant)
            pl.BlockSpec((1, Fp), lambda b: (0, 0)),               # bias (constant)
        ],
        out_specs=pl.BlockSpec((None, N, Fp), lambda b: (b, 0, 0)),
        scratch_shapes=[pltpu.VMEM((N, K * Fin), jnp.bfloat16)],   # Chebyshev basis
        compiler_params=pltpu.CompilerParams(
            dimension_semantics=("parallel",),                     # megacore over batch
            vmem_limit_bytes=_vmem_limit_bytes(),
        ),
        cost_estimate=pl.CostEstimate(flops=flops, transcendentals=0,
                                      bytes_accessed=bytes_accessed),
    )(x_f32, l2_bf, w_flat, b2d)

    # (B, N, Fp) -> (B, N, F_out)
    return out[..., :Fout].astype(x.dtype)


# ----------------------------------------------------------------------------
# Plain-JAX glue: edge list -> dense scaled Laplacian (matches forward() math)
# ----------------------------------------------------------------------------
def build_scaled_laplacian(edge_index, edge_weight, num_nodes, dtype=jnp.float32):
    row, col = edge_index[0], edge_index[1]
    keep = (row != col).astype(dtype)                  # remove_self_loops
    edge_weight = edge_weight.astype(dtype) * keep

    # deg = degree(row): unweighted count of outgoing edges per row node
    deg = jnp.zeros((num_nodes,), dtype).at[row].add(keep)
    deg_inv_sqrt = jnp.power(deg, -0.5)
    deg_inv_sqrt = jnp.where(jnp.isinf(deg_inv_sqrt), 0.0, deg_inv_sqrt)

    lap = -deg_inv_sqrt[row] * edge_weight * deg_inv_sqrt[col]

    # Densify: L[i, j] = sum of lap over edges (row=i, col=j)  (== spmm_batch)
    L = jnp.zeros((num_nodes, num_nodes), dtype).at[row, col].add(lap)
    return L


# ----------------------------------------------------------------------------
# References (plain JAX) - mirrors the original module's per-hop math.
# cast_bf16=True reproduces the kernel's bf16 matmul operands (f32 accumulation)
# for a tight structural check; cast_bf16=False is the pure-f32 ground truth.
# ----------------------------------------------------------------------------
def chebconv_reference(x, L, weight, bias, *, cast_bf16):
    cast = (lambda a: a.astype(jnp.bfloat16)) if cast_bf16 else (lambda a: a)
    K = weight.shape[0]
    tx0 = x.astype(jnp.float32)
    out = jnp.einsum('bnf,fo->bno', cast(tx0), cast(weight[0]),
                     preferred_element_type=jnp.float32)
    tx1 = None
    if K > 1:
        tx1 = jnp.einsum('nm,bmf->bnf', cast(L), cast(tx0),
                         preferred_element_type=jnp.float32)
        out = out + jnp.einsum('bnf,fo->bno', cast(tx1), cast(weight[1]),
                               preferred_element_type=jnp.float32)
    for k in range(2, K):
        tx2 = 2.0 * jnp.einsum('nm,bmf->bnf', cast(L), cast(tx1),
                               preferred_element_type=jnp.float32) - tx0
        out = out + jnp.einsum('bnf,fo->bno', cast(tx2), cast(weight[k]),
                               preferred_element_type=jnp.float32)
        tx0, tx1 = tx1, tx2
    return out + bias


# ----------------------------------------------------------------------------
# Main
# ----------------------------------------------------------------------------
if __name__ == "__main__":
    B, N, F_IN, F_OUT, K = 2, 16, 4, 32, 3             # 16 nodes = 4x4 grid graph

    key = jax.random.PRNGKey(0)
    k_x, k_w, k_b = jax.random.split(key, 3)

    # Deterministic parameter init mirroring reset_parameters():
    # uniform(-stdv, stdv) with stdv = 1 / sqrt(in_channels * K)
    stdv = 1.0 / math.sqrt(F_IN * K)
    weight = jax.random.uniform(k_w, (K, F_IN, F_OUT), jnp.float32, -stdv, stdv)
    bias = jax.random.uniform(k_b, (F_OUT,), jnp.float32, -stdv, stdv)

    # Input node features
    x = jax.random.normal(k_x, (B, N, F_IN), jnp.float32)

    # Build a bidirectional 4x4 grid graph (no self loops)
    side = 4
    rows, cols = [], []
    for r in range(side):
        for c in range(side):
            u = r * side + c
            if c + 1 < side:
                v = r * side + (c + 1)
                rows += [u, v]; cols += [v, u]
            if r + 1 < side:
                v = (r + 1) * side + c
                rows += [u, v]; cols += [v, u]
    edge_index = jnp.array([rows, cols], dtype=jnp.int32)
    edge_weight = jnp.ones((edge_index.shape[1],), jnp.float32)

    L = build_scaled_laplacian(edge_index, edge_weight, N)

    out = chebconv_pallas(x, L, weight, bias)
    out = jax.block_until_ready(out)
    assert out.shape == (B, N, F_OUT)

    # Tight check vs a reference using the same bf16 matmul operands (f32 accum)
    ref_bf16 = chebconv_reference(x, L, weight, bias, cast_bf16=True)
    assert jnp.allclose(out, ref_bf16, rtol=1e-3, atol=1e-3), "mismatch vs bf16-matched reference"

    # Looser check vs the pure-f32 ground truth (bf16 MXU operands introduce ~1% error)
    ref_f32 = chebconv_reference(x, L, weight, bias, cast_bf16=False)
    assert jnp.allclose(out, ref_f32, rtol=5e-2, atol=5e-2), "mismatch vs f32 reference"

    print("KERNEL_OK")
</pallas_src>

<mosaic_0001>
module attributes {stable_mosaic.version = 11 : i64} {
  func.func @chebconv_kernel(%arg0: i32, %arg1: memref<1x16x4xf32, #tpu.memory_space<vmem>>, %arg2: memref<16x16xbf16, #tpu.memory_space<vmem>>, %arg3: memref<12x128xbf16, #tpu.memory_space<vmem>>, %arg4: memref<1x128xf32, #tpu.memory_space<vmem>>, %arg5: memref<1x16x128xf32, #tpu.memory_space<vmem>>, %arg6: memref<16x12xbf16, #tpu.memory_space<vmem>>) attributes {dimension_semantics = [#tpu.dimension_semantics<parallel>], iteration_bounds = array<i64: 2>, scalar_prefetch = 0 : i64, scratch_operands = 1 : i64, tpu.core_type = #tpu.core_type<tc>, window_params = [{transform_indices = @transform_0, window_bounds = array<i64: 1, 16, 4>}, {pipeline_mode = #tpu.pipeline_mode<synchronous>, transform_indices = @transform_1, window_bounds = array<i64: 16, 16>}, {pipeline_mode = #tpu.pipeline_mode<synchronous>, transform_indices = @transform_2, window_bounds = array<i64: 12, 128>}, {pipeline_mode = #tpu.pipeline_mode<synchronous>, transform_indices = @transform_3, window_bounds = array<i64: 1, 128>}, {transform_indices = @transform_4, window_bounds = array<i64: 1, 16, 128>}]} {
    %c0 = arith.constant 0 : index
    %c0_0 = arith.constant 0 : index
    %0 = vector.load %arg2[%c0, %c0_0] : memref<16x16xbf16, #tpu.memory_space<vmem>>, vector<16x16xbf16>
    %c0_1 = arith.constant 0 : index
    %c0_2 = arith.constant 0 : index
    %c0_3 = arith.constant 0 : index
    %1 = vector.load %arg1[%c0_1, %c0_2, %c0_3] : memref<1x16x4xf32, #tpu.memory_space<vmem>>, vector<1x16x4xf32>
    %2 = vector.shape_cast %1 : vector<1x16x4xf32> to vector<16x4xf32>
    %3 = arith.truncf %2 : vector<16x4xf32> to vector<16x4xbf16>
    %c0_4 = arith.constant 0 : index
    %c0_5 = arith.constant 0 : index
    %4 = vector.load %arg6[%c0_4, %c0_5] : memref<16x12xbf16, #tpu.memory_space<vmem>>, vector<16x4xbf16>
    tpu.vector_store %arg6[%c0_4, %c0_5], %3 {strides = array<i32>} : memref<16x12xbf16, #tpu.memory_space<vmem>>, vector<16x4xbf16>,
    %cst = arith.constant dense<0.000000e+00> : vector<16x4xf32>
    %5 = tpu.matmul %0, %3, %cst {dimension_numbers = #tpu.dot_dimension_numbers<[1], [0], [0], [1], [0, 0, 1, 1], [], []>} : vector<16x16xbf16>, vector<16x4xbf16>, vector<16x4xf32> -> vector<16x4xf32>
    %cst_6 = arith.constant 5.000000e-01 : f32
    %6 = vector.broadcast %cst_6 : f32 to vector<16x4xf32>
    %7 = arith.mulf %6, %5 : vector<16x4xf32>
    %8 = arith.truncf %7 : vector<16x4xf32> to vector<16x4xbf16>
    %c0_7 = arith.constant 0 : index
    %c4 = arith.constant 4 : index
    %9 = vector.load %arg6[%c0_7, %c4] : memref<16x12xbf16, #tpu.memory_space<vmem>>, vector<16x4xbf16>
    tpu.vector_store %arg6[%c0_7, %c4], %8 {strides = array<i32>} : memref<16x12xbf16, #tpu.memory_space<vmem>>, vector<16x4xbf16>,
    %cst_8 = arith.constant dense<0.000000e+00> : vector<16x4xf32>
    %10 = tpu.matmul %0, %8, %cst_8 {dimension_numbers = #tpu.dot_dimension_numbers<[1], [0], [0], [1], [0, 0, 1, 1], [], []>} : vector<16x16xbf16>, vector<16x4xbf16>, vector<16x4xf32> -> vector<16x4xf32>
    %11 = arith.subf %10, %2 : vector<16x4xf32>
    %12 = arith.truncf %11 : vector<16x4xf32> to vector<16x4xbf16>
    %c0_9 = arith.constant 0 : index
    %c8 = arith.constant 8 : index
    %13 = vector.load %arg6[%c0_9, %c8] : memref<16x12xbf16, #tpu.memory_space<vmem>>, vector<16x4xbf16>
    tpu.vector_store %arg6[%c0_9, %c8], %12 {strides = array<i32>} : memref<16x12xbf16, #tpu.memory_space<vmem>>, vector<16x4xbf16>,
    %c0_10 = arith.constant 0 : index
    %c0_11 = arith.constant 0 : index
    %14 = vector.load %arg6[%c0_10, %c0_11] : memref<16x12xbf16, #tpu.memory_space<vmem>>, vector<16x12xbf16>
    %c0_12 = arith.constant 0 : index
    %c0_13 = arith.constant 0 : index
    %15 = vector.load %arg3[%c0_12, %c0_13] : memref<12x128xbf16, #tpu.memory_space<vmem>>, vector<12x128xbf16>
    %cst_14 = arith.constant dense<0.000000e+00> : vector<16x128xf32>
    %16 = tpu.matmul %14, %15, %cst_14 {dimension_numbers = #tpu.dot_dimension_numbers<[1], [0], [0], [1], [0, 0, 1, 1], [], []>} : vector<16x12xbf16>, vector<12x128xbf16>, vector<16x128xf32> -> vector<16x128xf32>
    %c0_15 = arith.constant 0 : index
    %c0_16 = arith.constant 0 : index
    %17 = vector.load %arg4[%c0_15, %c0_16] : memref<1x128xf32, #tpu.memory_space<vmem>>, vector<1x128xf32>
    %18 = vector.broadcast %17 : vector<1x128xf32> to vector<16x128xf32>
    %19 = arith.addf %16, %18 : vector<16x128xf32>
    %c0_17 = arith.constant 0 : index
    %c0_18 = arith.constant 0 : index
    %c0_19 = arith.constant 0 : index
    %20 = vector.load %arg5[%c0_17, %c0_18, %c0_19] : memref<1x16x128xf32, #tpu.memory_space<vmem>>, vector<1x16x128xf32>
    %21 = vector.shape_cast %20 : vector<1x16x128xf32> to vector<16x128xf32>
    %22 = vector.shape_cast %19 : vector<16x128xf32> to vector<1x16x128xf32>
    tpu.vector_store %arg5[%c0_17, %c0_18, %c0_19], %22 {strides = array<i32>} : memref<1x16x128xf32, #tpu.memory_space<vmem>>, vector<1x16x128xf32>,
    return
  }
  func.func @transform_0(%arg0: i32) -> (i32, i32, i32) {
    %c0_i32 = arith.constant 0 : i32
    %c0_i32_0 = arith.constant 0 : i32
    %c0_i32_1 = arith.constant 0 : i32
    return %arg0, %c0_i32, %c0_i32_0 : i32, i32, i32
  }
  func.func @transform_1(%arg0: i32) -> (i32, i32) {
    %c0_i32 = arith.constant 0 : i32
    %c0_i32_0 = arith.constant 0 : i32
    %c0_i32_1 = arith.constant 0 : i32
    return %c0_i32, %c0_i32_0 : i32, i32
  }
  func.func @transform_2(%arg0: i32) -> (i32, i32) {
    %c0_i32 = arith.constant 0 : i32
    %c0_i32_0 = arith.constant 0 : i32
    %c0_i32_1 = arith.constant 0 : i32
    return %c0_i32, %c0_i32_0 : i32, i32
  }
  func.func @transform_3(%arg0: i32) -> (i32, i32) {
    %c0_i32 = arith.constant 0 : i32
    %c0_i32_0 = arith.constant 0 : i32
    %c0_i32_1 = arith.constant 0 : i32
    return %c0_i32, %c0_i32_0 : i32, i32
  }
  func.func @transform_4(%arg0: i32) -> (i32, i32, i32) {
    %c0_i32 = arith.constant 0 : i32
    %c0_i32_0 = arith.constant 0 : i32
    %c0_i32_1 = arith.constant 0 : i32
    return %arg0, %c0_i32, %c0_i32_0 : i32, i32, i32
  }
}

</mosaic_0001>

<llo_original>
// kernel: tpu_custom_call.1
$region0: #{tpu_custom_call.1}
  #allocation0 [shape = 'u32[]', space=smem, size = 0x4, offset = 0x4, fixed_abs, tag = 'smem constant byte address 0x4 - core index']
  #allocation1 [shape = 'u32[72,128]{1,0:T(1,128)}', space=vmem, size = 0x9000, scoped, tag = 'internal scratch']
  #allocation2 [shape = 'bf16[16,12]{1,0:T(8,128)(2,1)}', space=vmem, size = 0x1000, scoped, tag = 'scratch operand']
  %s0 = inlined_call_operand.vmem [shape: f32[2,16,4], index: 0, kind: input, shape index: {}]
  %s1 = inlined_call_operand.vmem [shape: bf16[16,16], index: 1, kind: input, shape index: {}]
  %s2 = inlined_call_operand.vmem [shape: bf16[12,128], index: 2, kind: input, shape index: {}]
  %s3 = inlined_call_operand.vmem [shape: f32[1,128], index: 3, kind: input, shape index: {}]
  %s4 = inlined_call_operand.hbm [shape: f32[2,16,128], index: 4, kind: output, shape index: {}]
  %s5 = sld [smem:[#allocation0]]
  $region49: #{tpu_custom_call.1} parent=0
    _
  %s7 = ssub.s32 1, %s5
  %s8 = scalar_select 0, %s7, %s5
  $region1: #{tpu_custom_call.1} parent=0
    #allocation3 [shape = 'u8[16384]{0}', space=vmem, size = 0x4000, scoped, tag = 'output window, operand 0']
    #allocation4 [shape = 's32[2]{0}', space=sflag, size = 0x8, scoped, tag = 'scoped memory for tpu_custom_call.1']
    %9 = vsyncpa [#allocation4], 0
    %s10 = scalar_lea.sflag [#allocation4], 1
    %11 = vsyncpa %s10, 0
    loop: start=0, step=1, limit=4
    $region2: #{tpu_custom_call.1} parent=1 // loop_pre_header
      _
    $region3: #{tpu_custom_call.1} parent=1 // loop_header
      %s13 = sphi 0, %s17
      %p14 = scmp.ge.s32.totalorder %s13, 4
      %s23 = sphi 0, %s25
      %s26 = sphi 0, %s23
      %s27 = sphi 0, %s26
      %s43 = sphi 0, %s27
      %s47 = sphi 0, %s47
      %s49 = sphi 0, %s47
      %s50 = sphi 0, %s49
      %s64 = sphi 0, %s50
      %s68 = sphi 0, %s68
      %s70 = sphi 0, %s68
      %s71 = sphi 0, %s70
      %s85 = sphi 0, %s71
      %s89 = sphi 0, %s89
      %s91 = sphi 0, %s89
      %s92 = sphi 0, %s91
      %s106 = sphi 0, %s92
      %s112 = sphi 0, %s114
      %s115 = sphi 0, %s112
      %s116 = sphi 0, %s115
      %s132 = sphi 0, %s116
    $region4: #{tpu_custom_call.1} parent=1 // loop_header_branch
      %16 = sbr.rel (%p14) target = $region8
    $region5: #{tpu_custom_call.1} parent=1 // loop_body
      %s18 = ssub.s32 %s13, 1
      %s19 = ssub.s32 %s13, 2
      %s20 = sadd.s32 %s13, 1
      %s21 = ssub.s32 %s13, %s20
      %p22 = scmp.eq.s32.totalorder %s21, 0
      %s24 = sadd.s32 %s23, 1
      %s25 = scalar_select %p22, %s23, %s24
      %p28 = pneg %p22
      %p29 = scmp.eq.s32.totalorder %s13, 1
      %p30 = por %p28, %p29
      %p31 = scmp.ne.s32.totalorder %s23, %s26
      %p32 = scmp.eq.s32.totalorder %s13, 0
      %p33 = por %p31, %p32
      %p34 = scmp.ne.s32.totalorder %s23, %s26
      %p35 = scmp.eq.s32.totalorder %s18, 1
      %p36 = por %p34, %p35
      %p37 = scmp.ne.s32.totalorder %s26, %s27
      %p38 = scmp.eq.s32.totalorder %s18, 0
      %p39 = por %p37, %p38
      %p40 = scmp.ne.s32.totalorder %s26, %s27
      %p41 = scmp.eq.s32.totalorder %s19, 1
      %p42 = por %p40, %p41
      %p44 = scmp.ne.s32.totalorder %s27, %s43
      %p45 = scmp.eq.s32.totalorder %s19, 0
      %p46 = por %p44, %p45
      %s48 = sadd.s32 %s47, 1
      %p51 = scmp.eq.s32.totalorder %s13, 1
      %p52 = scmp.ne.s32.totalorder %s47, %s49
      %p53 = scmp.eq.s32.totalorder %s13, 0
      %p54 = por %p52, %p53
      %p55 = scmp.ne.s32.totalorder %s47, %s49
      %p56 = scmp.eq.s32.totalorder %s18, 1
      %p57 = por %p55, %p56
      %p58 = scmp.ne.s32.totalorder %s49, %s50
      %p59 = scmp.eq.s32.totalorder %s18, 0
      %p60 = por %p58, %p59
      %p61 = scmp.ne.s32.totalorder %s49, %s50
      %p62 = scmp.eq.s32.totalorder %s19, 1
      %p63 = por %p61, %p62
      %p65 = scmp.ne.s32.totalorder %s50, %s64
      %p66 = scmp.eq.s32.totalorder %s19, 0
      %p67 = por %p65, %p66
      %s69 = sadd.s32 %s68, 1
      %p72 = scmp.eq.s32.totalorder %s13, 1
      %p73 = scmp.ne.s32.totalorder %s68, %s70
      %p74 = scmp.eq.s32.totalorder %s13, 0
      %p75 = por %p73, %p74
      %p76 = scmp.ne.s32.totalorder %s68, %s70
      %p77 = scmp.eq.s32.totalorder %s18, 1
      %p78 = por %p76, %p77
      %p79 = scmp.ne.s32.totalorder %s70, %s71
      %p80 = scmp.eq.s32.totalorder %s18, 0
      %p81 = por %p79, %p80
      %p82 = scmp.ne.s32.totalorder %s70, %s71
      %p83 = scmp.eq.s32.totalorder %s19, 1
      %p84 = por %p82, %p83
      %p86 = scmp.ne.s32.totalorder %s71, %s85
      %p87 = scmp.eq.s32.totalorder %s19, 0
      %p88 = por %p86, %p87
      %s90 = sadd.s32 %s89, 1
      %p93 = scmp.eq.s32.totalorder %s13, 1
      %p94 = scmp.ne.s32.totalorder %s89, %s91
      %p95 = scmp.eq.s32.totalorder %s13, 0
      %p96 = por %p94, %p95
      %p97 = scmp.ne.s32.totalorder %s89, %s91
      %p98 = scmp.eq.s32.totalorder %s18, 1
      %p99 = por %p97, %p98
      %p100 = scmp.ne.s32.totalorder %s91, %s92
      %p101 = scmp.eq.s32.totalorder %s18, 0
      %p102 = por %p100, %p101
      %p103 = scmp.ne.s32.totalorder %s91, %s92
      %p104 = scmp.eq.s32.totalorder %s19, 1
      %p105 = por %p103, %p104
      %p107 = scmp.ne.s32.totalorder %s92, %s106
      %p108 = scmp.eq.s32.totalorder %s19, 0
      %p109 = por %p107, %p108
      %s110 = ssub.s32 %s13, %s20
      %p111 = scmp.eq.s32.totalorder %s110, 0
      %s113 = sadd.s32 %s112, 1
      %s114 = scalar_select %p111, %s112, %s113
      %p117 = pneg %p111
      %p118 = scmp.eq.s32.totalorder %s13, 1
      %p119 = por %p117, %p118
      %p120 = scmp.ne.s32.totalorder %s112, %s115
      %p121 = scmp.eq.s32.totalorder %s13, 0
      %p122 = por %p120, %p121
      %p123 = scmp.ne.s32.totalorder %s112, %s115
      %p124 = scmp.eq.s32.totalorder %s18, 1
      %p125 = por %p123, %p124
      %p126 = scmp.ne.s32.totalorder %s115, %s116
      %p127 = scmp.eq.s32.totalorder %s18, 0
      %p128 = por %p126, %p127
      %p129 = scmp.ne.s32.totalorder %s115, %s116
      %p130 = scmp.eq.s32.totalorder %s19, 1
      %p131 = por %p129, %p130
      %p133 = scmp.ne.s32.totalorder %s116, %s132
      %p134 = scmp.eq.s32.totalorder %s19, 0
      %p135 = por %p133, %p134
      %p136 = scmp.le.s32.totalorder 1, %s13
      %p137 = scmp.lt.s32.totalorder %s13, 3
      %p138 = pnand %p136, %p137
      %p139 = pneg %p138
      // Predicated region
      $region9: #{tpu_custom_call.1} parent=5 // pred_check
        _
      $region10: #{tpu_custom_call.1} parent=5 // pred_check_branch
        %141 = sbr.rel (%p138) target = $region12
      $region11: #{tpu_custom_call.1} parent=5 // pred_region
        %s142 = ssub.s32 %s13, 1
        // Predicated region
        $region13: #{tpu_custom_call.1} parent=11 // pred_check
          %p143 = pneg %p60
        $region14: #{tpu_custom_call.1} parent=11 // pred_check_branch
          %145 = sbr.rel (%p143) target = $region16
        $region15: #{tpu_custom_call.1} parent=11 // pred_region
          _
        $region16: #{tpu_custom_call.1} parent=11 // pred_fallthru
          _
        // Predicated region
        $region17: #{tpu_custom_call.1} parent=11 // pred_check
          %p146 = pneg %p81
        $region18: #{tpu_custom_call.1} parent=11 // pred_check_branch
          %148 = sbr.rel (%p146) target = $region20
        $region19: #{tpu_custom_call.1} parent=11 // pred_region
          _
        $region20: #{tpu_custom_call.1} parent=11 // pred_fallthru
          _
        // Predicated region
        $region21: #{tpu_custom_call.1} parent=11 // pred_check
          %p149 = pneg %p102
        $region22: #{tpu_custom_call.1} parent=11 // pred_check_branch
          %151 = sbr.rel (%p149) target = $region24
        $region23: #{tpu_custom_call.1} parent=11 // pred_region
          _
        $region24: #{tpu_custom_call.1} parent=11 // pred_fallthru
          _
      $region12: #{tpu_custom_call.1} parent=5 // pred_fallthru
        _
      %p152 = scmp.lt.s32.totalorder %s13, 2
      // Predicated region
      $region25: #{tpu_custom_call.1} parent=5 // pred_check
        %p153 = pneg %p152
      $region26: #{tpu_custom_call.1} parent=5 // pred_check_branch
        %155 = sbr.rel (%p153) target = $region28
      $region27: #{tpu_custom_call.1} parent=5 // pred_region
        // Predicated region
        $region29: #{tpu_custom_call.1} parent=27 // pred_check
          %p156 = pneg %p33
        $region30: #{tpu_custom_call.1} parent=27 // pred_check_branch
          %158 = sbr.rel (%p156) target = $region32
        $region31: #{tpu_custom_call.1} parent=27 // pred_region
          %p159 = scmp.lt.s32.totalorder %s13, 1
          %s160 = scalar_select %p159, %s13, 1
          %s161 = smul.addr %s160, 2
          %s162 = smul.addr %s161, 8
          %s163 = scalar_lea.vmem %s0, %s162
        $region32: #{tpu_custom_call.1} parent=27 // pred_fallthru
          _
      $region28: #{tpu_custom_call.1} parent=5 // pred_fallthru
        _
      %p164 = scmp.le.s32.totalorder 1, %s13
      %p165 = scmp.lt.s32.totalorder %s13, 3
      %p166 = pnand %p164, %p165
      %p167 = pneg %p166
      // Predicated region
      $region33: #{tpu_custom_call.1} parent=5 // pred_check
        _
      $region34: #{tpu_custom_call.1} parent=5 // pred_check_branch
        %169 = sbr.rel (%p166) target = $region36
      $region35: #{tpu_custom_call.1} parent=5 // pred_region
        %s170 = ssub.s32 %s13, 1
        %p171 = scmp.lt.s32.totalorder %s18, 1
        %s172 = scalar_select %p171, %s18, 1
        %s173 = smul.addr %s172, 2
        %s174 = smul.addr %s173, 8
        %s175 = scalar_lea.vmem %s0, %s174
        %p176 = pneg %p39
        %p177 = pneg %p36
        %p178 = pneg %p60
        %p179 = pneg %p57
        %p180 = pneg %p81
        %p181 = pneg %p78
        %p182 = pneg %p102
        %p183 = pneg %p99
        %p184 = pneg %p128
        %p185 = pneg %p125
        %s186 = sand.u32 %s115, 1
        %s187 = scalar_lea.sflag [#allocation4], %s186
        %s188 = sand.u32 %s115, 1
        %s189 = smul.addr %s188, 16
        %s190 = scalar_lea.vmem [#allocation3], %s189
        %p191 = scmp.lt.s32.totalorder %s18, 1
        %s192 = scalar_select %p191, %s18, 1
        %s193 = smul.addr %s192, 2
        %s194 = smul.addr %s193, 8
        %s195 = scalar_lea.vmem %s0, %s194
        %v197 = vld [vmem:[%s1] sm:$0xf]
        %v198 = vld [vmem:[%s1 + $0x4] sm:$0xf]
        %v199 = vld [vmem:[%s195] sm:$0xff]
        %v200 = vld [vmem:[%s195 + $0x8] sm:$0xff]
        %v201 = vpack.c.bf16 %v199, %v199
        %v202 = vpack.c.bf16 %v200, %v200
        %vm203 = vcmask 27648
        %204 = vst.msk [vmem:[#allocation2] sm:$0xf] %vm203, %v201
        %205 = vst.msk [vmem:[#allocation2 + $0x4] sm:$0xf] %vm203, %v202
        %v208 = vunpack.c.l.b16 %v197
        %v209 = vunpack.c.l.b16 %v198
        %v210 = vpack.c.b16 %v209, %v208
        %v213 = vunpack.c.l.b16 %v201
        %v214 = vunpack.c.l.b16 %v202
        %v215 = vpack.c.b16 %v214, %v213
        %vm217 = vcmask 130048
        %v219 = vsel %vm217, %v210, 0
        %221 = vmatpush.bf16.msra.mxu0 0
        %222 = vmatpush.bf16.msra.mxu0 0
        %223 = vmatpush.bf16.msra.mxu0 0
        %224 = vmatpush.bf16.msra.mxu0 0
        %225 = vmatpush.bf16.msra.mxu0 0
        %226 = vmatpush.bf16.msra.mxu0 0
        %227 = vmatpush.bf16.msra.mxu0 0
        %228 = vmatpush.bf16.msra.mxu0 %v215
        %229 = vmatmul.bf16.gmra.mxu0 %v219
        %v230 = vpop.f32.mrf.mxu0
        %v231 = vadd.f32 0.0, %v230
        %v232 = vpop.f32.mrf.mxu0
        %v233 = vadd.f32 0.0, %v232
        %234 = vdwg.mxu0
        %v235 = vmul.f32 %v231, 0.5
        %v236 = vmul.f32 %v233, 0.5
        %v237 = vpack.c.bf16 %v235, %v235
        %v238 = vpack.c.bf16 %v236, %v236
        %241 = vrot.lane.b32.xlu0 %v237, 4
        %v242 = vpop.permute.xlu0 %241
        %243 = vrot.lane.b32.xlu0 %v238, 4
        %v244 = vpop.permute.xlu0 %243
        %vm247 = vcmask 60448
        %248 = vst.msk [vmem:[#allocation2] sm:$0xf] %vm247, %v242
        %249 = vst.msk [vmem:[#allocation2 + $0x4] sm:$0xf] %vm247, %v244
        %v250 = vunpack.c.l.b16 %v237
        %v251 = vunpack.c.l.b16 %v238
        %v252 = vpack.c.b16 %v251, %v250
        %254 = vmatpush.bf16.msra.mxu0 0
        %255 = vmatpush.bf16.msra.mxu0 0
        %256 = vmatpush.bf16.msra.mxu0 0
        %257 = vmatpush.bf16.msra.mxu0 0
        %258 = vmatpush.bf16.msra.mxu0 0
        %259 = vmatpush.bf16.msra.mxu0 0
        %260 = vmatpush.bf16.msra.mxu0 0
        %261 = vmatpush.bf16.msra.mxu0 %v252
        %262 = vmatmul.bf16.gmra.mxu0 %v219
        %v263 = vpop.f32.mrf.mxu0
        %v264 = vadd.f32 0.0, %v263
        %v265 = vpop.f32.mrf.mxu0
        %v266 = vadd.f32 0.0, %v265
        %267 = vdwg.mxu0
        %v268 = vsub.f32 %v264, %v199
        %v269 = vsub.f32 %v266, %v200
        %v270 = vpack.c.bf16 %v268, %v268
        %v271 = vpack.c.bf16 %v269, %v269
        %274 = vrot.lane.b32.xlu0 %v270, 8
        %v275 = vpop.permute.xlu0 %274
        %276 = vrot.lane.b32.xlu0 %v271, 8
        %v277 = vpop.permute.xlu0 %276
        %vm280 = vcmask 93248
        %281 = vst.msk [vmem:[#allocation2] sm:$0xf] %vm280, %v275
        %282 = vst.msk [vmem:[#allocation2 + $0x4] sm:$0xf] %vm280, %v277
        %v283 = vld [vmem:[#allocation2] sm:$0xf]
        %v284 = vld [vmem:[#allocation2 + $0x4] sm:$0xf]
        %v285 = vld [vmem:[%s2] sm:$0xf]
        %v286 = vld [vmem:[%s2 + $0x4] sm:$0x3]
        %v287 = vld [vmem:[%s3] sm:$0x1]
        %v289 = vperm.slane %v287, 0
        %v293 = vunpack.c.l.b16 %v283
        %v294 = vunpack.c.l.b16 %v284
        %v295 = vpack.c.b16 %v294, %v293
        %v298 = vunpack.c.l.b16 %v285
        %v299 = vunpack.c.l.b16 %v286
        %v300 = vpack.c.b16 %v299, %v298
        %vm301 = vcmask 97280
        %v303 = vsel %vm301, %v295, 0
        %vm305 = vcmask 1045504
        %v307 = vsel %vm305, %v300, 0
        %309 = vmatpush.bf16.msra.mxu0 0
        %310 = vmatpush.bf16.msra.mxu0 0
        %311 = vmatpush.bf16.msra.mxu0 0
        %312 = vmatpush.bf16.msra.mxu0 0
        %313 = vmatpush.bf16.msra.mxu0 0
        %314 = vmatpush.bf16.msra.mxu0 0
        %315 = vmatpush.bf16.msra.mxu0 0
        %316 = vmatpush.bf16.msra.mxu0 %v307
        %317 = vmatmul.bf16.gmra.mxu0 %v303
        %v318 = vpop.f32.mrf.mxu0
        %v319 = vadd.f32 %v289, %v318
        %v320 = vpop.f32.mrf.mxu0
        %v321 = vadd.f32 %v289, %v320
        %322 = vdwg.mxu0
        %323 = vst [vmem:[%s190] sm:$0xff] %v319
        %324 = vst [vmem:[%s190 + $0x8] sm:$0xff] %v321
        %s325 = sand.u32 %s115, 1
        %s326 = scalar_lea.sflag [#allocation4], %s325
        %s327 = sand.u32 %s115, 1
        %s328 = smul.addr %s327, 16
        %s329 = scalar_lea.vmem [#allocation3], %s328
        // Predicated region
        $region37: #{tpu_custom_call.1} parent=35 // pred_check
          %p330 = pneg %p125
        $region38: #{tpu_custom_call.1} parent=35 // pred_check_branch
          %332 = sbr.rel (%p330) target = $region40
        $region39: #{tpu_custom_call.1} parent=35 // pred_region
          %334 = vsyncadd %s326, 0
          %s335 = smul.addr %s18, 2
          %s336 = smul.addr %s335, 8
          %s337 = scalar_lea.hbm %s4, %s336
          %s338 = sshll.u32 %s329, 4
          %s339 = int_to_ptr.vmem [resolvable:$true] %s338
          %s340 = sshll.u32 %s337, 4
          %s341 = int_to_ptr.hbm [resolvable:$true] %s340
          %346 = dma.vmem_to_hbm [thread:$0]  %s339, 256, %s341, %s326, 128, 128, 8
        $region40: #{tpu_custom_call.1} parent=35 // pred_fallthru
          _
      $region36: #{tpu_custom_call.1} parent=5 // pred_fallthru
        _
      %p347 = scmp.le.s32.totalorder 2, %s13
      // Predicated region
      $region41: #{tpu_custom_call.1} parent=5 // pred_check
        %p348 = pneg %p347
      $region42: #{tpu_custom_call.1} parent=5 // pred_check_branch
        %350 = sbr.rel (%p348) target = $region44
      $region43: #{tpu_custom_call.1} parent=5 // pred_region
        %s351 = ssub.s32 %s13, 2
        // Predicated region
        $region45: #{tpu_custom_call.1} parent=43 // pred_check
          %p352 = pneg %p131
        $region46: #{tpu_custom_call.1} parent=43 // pred_check_branch
          %354 = sbr.rel (%p352) target = $region48
        $region47: #{tpu_custom_call.1} parent=43 // pred_region
          %s355 = sand.u32 %s116, 1
          %s356 = scalar_lea.sflag [#allocation4], %s355
          %s357 = sand.u32 %s116, 1
          %s358 = smul.addr %s357, 16
          %s359 = scalar_lea.vmem [#allocation3], %s358
          %361 = dma.done %s356, 256
        $region48: #{tpu_custom_call.1} parent=43 // pred_fallthru
          _
      $region44: #{tpu_custom_call.1} parent=5 // pred_fallthru
        _
    $region6: #{tpu_custom_call.1} parent=1 // loop_footer
      %s17 = sadd.s32 1, %s13
    $region7: #{tpu_custom_call.1} parent=1 // loop_footer_branch
      %12 = sbr.rel target = $region3
    $region8: #{tpu_custom_call.1} parent=1 // loop_exit
      _
    %362 = vsyncpa [#allocation4], 1
    %s363 = scalar_lea.sflag [#allocation4], 1
    %364 = vsyncpa %s363, 1

</llo_original>
